<compile_context>
chip_gen: v6e
topology: v6e:2x2x1
jax: 0.10.0
libtpu: 0.0.40
codegen_flags: <defaults>
</compile_context>

<pallas_src>
from functools import reduce
from operator import mul

import jax
import jax.numpy as jnp
from jax.experimental import pallas as pl
from jax.experimental.pallas import tpu as pltpu


def mlp_contrastive_kernel(x_ref, w1_ref, b1_ref, w2_ref, b2_ref, o_ref):
    # x_ref: (TM, K) raw (un-pooled) flattened input tile.
    # w1_ref: (K, 32) pooling-folded first-layer weights.
    x = x_ref[...]
    h = jnp.dot(x, w1_ref[...], preferred_element_type=jnp.float32) + b1_ref[...]
    h = jnp.maximum(h, 0.0)                                     # ReLU

    f = jnp.dot(h, w2_ref[...], preferred_element_type=jnp.float32) + b2_ref[...]

    inv_norm = jax.lax.rsqrt(jnp.sum(f * f, axis=-1, keepdims=True))
    o_ref[...] = f * inv_norm


def _round_up(n, m):
    return ((n + m - 1) // m) * m


def mlp_contrastive_forward(x, w1, b1, w2, b2, *, tm=512):
    """x: (N, C, D, H, W) float32. Returns (N, 16) float32 (L2-normalized rows)."""
    N, C, D, H, W = x.shape
    Dp, Hp, Wp = D // 2, H // 2, W // 2
    K = C * D * H * W                       # raw (un-pooled) flattened length

    # Fold AvgPool3d(2) into the first Linear: every raw element (c,d,h,w)
    # contributes w1[pooled_flat_idx(c, d//2, h//2, w//2)] / 8 to the hidden layer.
    c = jnp.arange(C)[:, None, None, None]
    d = jnp.arange(D)[None, :, None, None]
    h = jnp.arange(H)[None, None, :, None]
    w = jnp.arange(W)[None, None, None, :]
    pooled_idx = (((c * Dp + d // 2) * Hp + h // 2) * Wp + (w // 2)).reshape(-1)
    w1_exp = w1[pooled_idx, :] * (1.0 / 8.0)                    # (K, 32)

    x_flat = x.reshape(N, K)                                    # native NCDHW order
    b1_2d = b1.reshape(1, -1)
    b2_2d = b2.reshape(1, -1)

    # Row-tile size: TM rows per grid step (sublane-aligned); pad batch to a
    # multiple of TM (padded rows are sliced off afterwards).
    TM = min(tm, max(8, _round_up(N, 8)))
    Npad = _round_up(N, TM)
    if Npad != N:
        x_flat = jnp.pad(x_flat, ((0, Npad - N), (0, 0)))

    out = pl.pallas_call(
        mlp_contrastive_kernel,
        out_shape=jax.ShapeDtypeStruct((Npad, 16), jnp.float32),
        grid=(Npad // TM,),
        in_specs=[
            pl.BlockSpec((TM, K), lambda i: (i, 0)),        # x tile (pipelined)
            pl.BlockSpec((K, 32), lambda i: (0, 0)),        # w1_exp (resident)
            pl.BlockSpec((1, 32), lambda i: (0, 0)),        # b1
            pl.BlockSpec((32, 16), lambda i: (0, 0)),       # w2
            pl.BlockSpec((1, 16), lambda i: (0, 0)),        # b2
        ],
        out_specs=pl.BlockSpec((TM, 16), lambda i: (i, 0)),
        compiler_params=pltpu.CompilerParams(
            dimension_semantics=("parallel",),              # shards across TCs on v7x
            vmem_limit_bytes=32 * 1024 * 1024,
        ),
    )(x_flat, w1_exp, b1_2d, w2, b2_2d)
    return out[:N]


def reference_forward(x, w1, b1, w2, b2):
    """Plain-JAX reference matching the PyTorch module."""
    N, C, D, H, W = x.shape
    xp = x.reshape(N, C, D // 2, 2, H // 2, 2, W // 2, 2).mean(axis=(3, 5, 7))
    flat = xp.reshape(N, -1)
    h = jnp.maximum(flat @ w1 + b1, 0.0)
    f = h @ w2 + b2
    return f / jnp.sqrt(jnp.sum(f * f, axis=-1, keepdims=True))


if __name__ == "__main__":
    # Config matching the PyTorch module's in_channels formula.
    config = {"img_size": (8, 8, 8), "half_size": True}
    in_channels = int(reduce(mul, config["img_size"], 1) / 2 ** len(config["img_size"]) * 30)
    if config["half_size"]:
        in_channels = int(in_channels / 2 ** len(config["img_size"]))   # -> 240

    # half_size => input spatial dims are half of img_size; channels = 30.
    B, C = 2, 30
    D = H = W = config["img_size"][0] // 2   # 4
    assert in_channels == C * (D // 2) * (H // 2) * (W // 2)

    key = jax.random.PRNGKey(0)
    kx, k1, k2, k3, k4 = jax.random.split(key, 5)

    x = jax.random.normal(kx, (B, C, D, H, W), dtype=jnp.float32)

    # Deterministic parameter init (Linear(in_channels, 32), Linear(32, 16)).
    # Stored transposed vs. PyTorch (in, out) so the kernel does x @ W.
    w1 = jax.random.normal(k1, (in_channels, 32), dtype=jnp.float32) * (1.0 / jnp.sqrt(in_channels))
    b1 = jax.random.normal(k2, (32,), dtype=jnp.float32) * 0.01
    w2 = jax.random.normal(k3, (32, 16), dtype=jnp.float32) * (1.0 / jnp.sqrt(32.0))
    b2 = jax.random.normal(k4, (16,), dtype=jnp.float32) * 0.01

    out = mlp_contrastive_forward(x, w1, b1, w2, b2)
    out = jax.block_until_ready(out)

    ref = reference_forward(x, w1, b1, w2, b2)
    assert out.shape == (B, 16)
    assert jnp.allclose(out, ref, atol=1e-4, rtol=1e-4), (
        f"max abs err = {jnp.max(jnp.abs(out - ref))}")

    print("KERNEL_OK")
</pallas_src>

<mosaic_0001>
module attributes {stable_mosaic.version = 11 : i64} {
  func.func @mlp_contrastive_kernel(%arg0: i32, %arg1: memref<8x1920xf32, #tpu.memory_space<vmem>>, %arg2: memref<1920x32xf32, #tpu.memory_space<vmem>>, %arg3: memref<1x32xf32, #tpu.memory_space<vmem>>, %arg4: memref<32x16xf32, #tpu.memory_space<vmem>>, %arg5: memref<1x16xf32, #tpu.memory_space<vmem>>, %arg6: memref<8x16xf32, #tpu.memory_space<vmem>>) attributes {dimension_semantics = [#tpu.dimension_semantics<parallel>], iteration_bounds = array<i64: 1>, scalar_prefetch = 0 : i64, scratch_operands = 0 : i64, tpu.core_type = #tpu.core_type<tc>, window_params = [{transform_indices = @transform_0, window_bounds = array<i64: 8, 1920>}, {pipeline_mode = #tpu.pipeline_mode<synchronous>, transform_indices = @transform_1, window_bounds = array<i64: 1920, 32>}, {pipeline_mode = #tpu.pipeline_mode<synchronous>, transform_indices = @transform_2, window_bounds = array<i64: 1, 32>}, {pipeline_mode = #tpu.pipeline_mode<synchronous>, transform_indices = @transform_3, window_bounds = array<i64: 32, 16>}, {pipeline_mode = #tpu.pipeline_mode<synchronous>, transform_indices = @transform_4, window_bounds = array<i64: 1, 16>}, {transform_indices = @transform_5, window_bounds = array<i64: 8, 16>}]} {
    %c0 = arith.constant 0 : index
    %c0_0 = arith.constant 0 : index
    %0 = vector.load %arg1[%c0, %c0_0] : memref<8x1920xf32, #tpu.memory_space<vmem>>, vector<8x1920xf32>
    %c0_1 = arith.constant 0 : index
    %c0_2 = arith.constant 0 : index
    %1 = vector.load %arg2[%c0_1, %c0_2] : memref<1920x32xf32, #tpu.memory_space<vmem>>, vector<1920x32xf32>
    %cst = arith.constant dense<0.000000e+00> : vector<8x32xf32>
    %2 = tpu.matmul %0, %1, %cst {dimension_numbers = #tpu.dot_dimension_numbers<[1], [0], [0], [1], [0, 0, 1, 1], [], []>} : vector<8x1920xf32>, vector<1920x32xf32>, vector<8x32xf32> -> vector<8x32xf32>
    %c0_3 = arith.constant 0 : index
    %c0_4 = arith.constant 0 : index
    %3 = vector.load %arg3[%c0_3, %c0_4] : memref<1x32xf32, #tpu.memory_space<vmem>>, vector<1x32xf32>
    %4 = vector.broadcast %3 : vector<1x32xf32> to vector<8x32xf32>
    %5 = arith.addf %2, %4 : vector<8x32xf32>
    %cst_5 = arith.constant 0.000000e+00 : f32
    %6 = vector.broadcast %cst_5 : f32 to vector<8x32xf32>
    %7 = arith.maximumf %5, %6 : vector<8x32xf32>
    %c0_6 = arith.constant 0 : index
    %c0_7 = arith.constant 0 : index
    %8 = vector.load %arg4[%c0_6, %c0_7] : memref<32x16xf32, #tpu.memory_space<vmem>>, vector<32x16xf32>
    %cst_8 = arith.constant dense<0.000000e+00> : vector<8x16xf32>
    %9 = tpu.matmul %7, %8, %cst_8 {dimension_numbers = #tpu.dot_dimension_numbers<[1], [0], [0], [1], [0, 0, 1, 1], [], []>} : vector<8x32xf32>, vector<32x16xf32>, vector<8x16xf32> -> vector<8x16xf32>
    %c0_9 = arith.constant 0 : index
    %c0_10 = arith.constant 0 : index
    %10 = vector.load %arg5[%c0_9, %c0_10] : memref<1x16xf32, #tpu.memory_space<vmem>>, vector<1x16xf32>
    %11 = vector.broadcast %10 : vector<1x16xf32> to vector<8x16xf32>
    %12 = arith.addf %9, %11 : vector<8x16xf32>
    %13 = arith.mulf %12, %12 : vector<8x16xf32>
    %cst_11 = arith.constant dense<0.000000e+00> : vector<8xf32>
    %14 = vector.multi_reduction <add>, %13, %cst_11 [1] : vector<8x16xf32> to vector<8xf32>
    %15 = vector.shape_cast %14 : vector<8xf32> to vector<8x1xf32>
    %16 = math.rsqrt %15 : vector<8x1xf32>
    %17 = vector.broadcast %16 : vector<8x1xf32> to vector<8x16xf32>
    %18 = arith.mulf %12, %17 : vector<8x16xf32>
    %c0_12 = arith.constant 0 : index
    %c0_13 = arith.constant 0 : index
    %19 = vector.load %arg6[%c0_12, %c0_13] : memref<8x16xf32, #tpu.memory_space<vmem>>, vector<8x16xf32>
    tpu.vector_store %arg6[%c0_12, %c0_13], %18 {strides = array<i32>} : memref<8x16xf32, #tpu.memory_space<vmem>>, vector<8x16xf32>,
    return
  }
  func.func @transform_0(%arg0: i32) -> (i32, i32) {
    %c0_i32 = arith.constant 0 : i32
    %c0_i32_0 = arith.constant 0 : i32
    return %arg0, %c0_i32 : i32, i32
  }
  func.func @transform_1(%arg0: i32) -> (i32, i32) {
    %c0_i32 = arith.constant 0 : i32
    %c0_i32_0 = arith.constant 0 : i32
    %c0_i32_1 = arith.constant 0 : i32
    return %c0_i32, %c0_i32_0 : i32, i32
  }
  func.func @transform_2(%arg0: i32) -> (i32, i32) {
    %c0_i32 = arith.constant 0 : i32
    %c0_i32_0 = arith.constant 0 : i32
    %c0_i32_1 = arith.constant 0 : i32
    return %c0_i32, %c0_i32_0 : i32, i32
  }
  func.func @transform_3(%arg0: i32) -> (i32, i32) {
    %c0_i32 = arith.constant 0 : i32
    %c0_i32_0 = arith.constant 0 : i32
    %c0_i32_1 = arith.constant 0 : i32
    return %c0_i32, %c0_i32_0 : i32, i32
  }
  func.func @transform_4(%arg0: i32) -> (i32, i32) {
    %c0_i32 = arith.constant 0 : i32
    %c0_i32_0 = arith.constant 0 : i32
    %c0_i32_1 = arith.constant 0 : i32
    return %c0_i32, %c0_i32_0 : i32, i32
  }
  func.func @transform_5(%arg0: i32) -> (i32, i32) {
    %c0_i32 = arith.constant 0 : i32
    %c0_i32_0 = arith.constant 0 : i32
    return %arg0, %c0_i32 : i32, i32
  }
}

</mosaic_0001>

<llo_original>
// kernel: tpu_custom_call.1
$region0: #{tpu_custom_call.1}
  #allocation0 [shape = 'u32[]', space=smem, size = 0x4, offset = 0x4, fixed_abs, tag = 'smem constant byte address 0x4 - core index']
  #allocation1 [shape = 'u32[144,128]{1,0:T(1,128)}', space=vmem, size = 0x12000, scoped, tag = 'internal scratch']
  %s0 = inlined_call_operand.vmem [shape: f32[8,1920], index: 0, kind: input, shape index: {}]
  %s1 = inlined_call_operand.vmem [shape: f32[1920,32], index: 1, kind: input, shape index: {}]
  %s2 = inlined_call_operand.vmem [shape: f32[1,32], index: 2, kind: input, shape index: {}]
  %s3 = inlined_call_operand.vmem [shape: f32[32,16], index: 3, kind: input, shape index: {}]
  %s4 = inlined_call_operand.vmem [shape: f32[1,16], index: 4, kind: input, shape index: {}]
  %s5 = inlined_call_operand.hbm [shape: f32[8,16], index: 5, kind: output, shape index: {}]
  %s6 = sld [smem:[#allocation0]]
  $region30: #{tpu_custom_call.1} parent=0
    _
  %s8 = ssub.s32 1, %s6
  %s9 = scalar_select 0, %s8, %s6
  $region1: #{tpu_custom_call.1} parent=0
    #allocation2 [shape = 'u8[4096]{0}', space=vmem, size = 0x1000, scoped, tag = 'output window, operand 0, single buffered']
    #allocation3 [shape = 's32[1]{0}', space=sflag, size = 0x4, scoped, tag = 'scoped memory for tpu_custom_call.1']
    %10 = vsyncpa [#allocation3], 0
    // Predicated region
    $region2: #{tpu_custom_call.1} parent=1 // pred_check
      _
    $region3: #{tpu_custom_call.1} parent=1 // pred_check_branch
      %12 = sbr.rel (0) target = $region5
    $region4: #{tpu_custom_call.1} parent=1 // pred_region
      _
    $region5: #{tpu_custom_call.1} parent=1 // pred_fallthru
      _
    // Predicated region
    $region6: #{tpu_custom_call.1} parent=1 // pred_check
      _
    $region7: #{tpu_custom_call.1} parent=1 // pred_check_branch
      %14 = sbr.rel (0) target = $region9
    $region8: #{tpu_custom_call.1} parent=1 // pred_region
      _
    $region9: #{tpu_custom_call.1} parent=1 // pred_fallthru
      _
    // Predicated region
    $region10: #{tpu_custom_call.1} parent=1 // pred_check
      _
    $region11: #{tpu_custom_call.1} parent=1 // pred_check_branch
      %16 = sbr.rel (0) target = $region13
    $region12: #{tpu_custom_call.1} parent=1 // pred_region
      _
    $region13: #{tpu_custom_call.1} parent=1 // pred_fallthru
      _
    // Predicated region
    $region14: #{tpu_custom_call.1} parent=1 // pred_check
      _
    $region15: #{tpu_custom_call.1} parent=1 // pred_check_branch
      %18 = sbr.rel (0) target = $region17
    $region16: #{tpu_custom_call.1} parent=1 // pred_region
      _
    $region17: #{tpu_custom_call.1} parent=1 // pred_fallthru
      _
    // Predicated region
    $region18: #{tpu_custom_call.1} parent=1 // pred_check
      _
    $region19: #{tpu_custom_call.1} parent=1 // pred_check_branch
      %20 = sbr.rel (0) target = $region21
    $region20: #{tpu_custom_call.1} parent=1 // pred_region
      _
    $region21: #{tpu_custom_call.1} parent=1 // pred_fallthru
      _
    %v21 = vld [vmem:[%s0] sm:$0xff]
    %v22 = vld [vmem:[%s0 + $0x8] sm:$0xff]
    %v23 = vld [vmem:[%s0 + $0x10] sm:$0xff]
    %v24 = vld [vmem:[%s0 + $0x18] sm:$0xff]
    %v25 = vld [vmem:[%s0 + $0x20] sm:$0xff]
    %v26 = vld [vmem:[%s0 + $0x28] sm:$0xff]
    %v27 = vld [vmem:[%s0 + $0x30] sm:$0xff]
    %v28 = vld [vmem:[%s0 + $0x38] sm:$0xff]
    %v29 = vld [vmem:[%s0 + $0x40] sm:$0xff]
    %v30 = vld [vmem:[%s0 + $0x48] sm:$0xff]
    %v31 = vld [vmem:[%s0 + $0x50] sm:$0xff]
    %v32 = vld [vmem:[%s0 + $0x58] sm:$0xff]
    %v33 = vld [vmem:[%s0 + $0x60] sm:$0xff]
    %v34 = vld [vmem:[%s0 + $0x68] sm:$0xff]
    %v35 = vld [vmem:[%s0 + $0x70] sm:$0xff]
    %v36 = vld [vmem:[%s1] sm:$0xff]
    %v37 = vld [vmem:[%s1 + $0x8] sm:$0xff]
    %v38 = vld [vmem:[%s1 + $0x10] sm:$0xff]
    %v39 = vld [vmem:[%s1 + $0x18] sm:$0xff]
    %v40 = vld [vmem:[%s1 + $0x20] sm:$0xff]
    %v41 = vld [vmem:[%s1 + $0x28] sm:$0xff]
    %v42 = vld [vmem:[%s1 + $0x30] sm:$0xff]
    %v43 = vld [vmem:[%s1 + $0x38] sm:$0xff]
    %v44 = vld [vmem:[%s1 + $0x40] sm:$0xff]
    %v45 = vld [vmem:[%s1 + $0x48] sm:$0xff]
    %v46 = vld [vmem:[%s1 + $0x50] sm:$0xff]
    %v47 = vld [vmem:[%s1 + $0x58] sm:$0xff]
    %v48 = vld [vmem:[%s1 + $0x60] sm:$0xff]
    %v49 = vld [vmem:[%s1 + $0x68] sm:$0xff]
    %v50 = vld [vmem:[%s1 + $0x70] sm:$0xff]
    %v51 = vld [vmem:[%s1 + $0x78] sm:$0xff]
    %v52 = vld [vmem:[%s1 + $0x80] sm:$0xff]
    %v53 = vld [vmem:[%s1 + $0x88] sm:$0xff]
    %v54 = vld [vmem:[%s1 + $0x90] sm:$0xff]
    %v55 = vld [vmem:[%s1 + $0x98] sm:$0xff]
    %v56 = vld [vmem:[%s1 + $0xa0] sm:$0xff]
    %v57 = vld [vmem:[%s1 + $0xa8] sm:$0xff]
    %v58 = vld [vmem:[%s1 + $0xb0] sm:$0xff]
    %v59 = vld [vmem:[%s1 + $0xb8] sm:$0xff]
    %v60 = vld [vmem:[%s1 + $0xc0] sm:$0xff]
    %v61 = vld [vmem:[%s1 + $0xc8] sm:$0xff]
    %v62 = vld [vmem:[%s1 + $0xd0] sm:$0xff]
    %v63 = vld [vmem:[%s1 + $0xd8] sm:$0xff]
    %v64 = vld [vmem:[%s1 + $0xe0] sm:$0xff]
    %v65 = vld [vmem:[%s1 + $0xe8] sm:$0xff]
    %v66 = vld [vmem:[%s1 + $0xf0] sm:$0xff]
    %v67 = vld [vmem:[%s1 + $0xf8] sm:$0xff]
    %v68 = vld [vmem:[%s1 + $0x100] sm:$0xff]
    %v69 = vld [vmem:[%s1 + $0x108] sm:$0xff]
    %v70 = vld [vmem:[%s1 + $0x110] sm:$0xff]
    %v71 = vld [vmem:[%s1 + $0x118] sm:$0xff]
    %v72 = vld [vmem:[%s1 + $0x120] sm:$0xff]
    %v73 = vld [vmem:[%s1 + $0x128] sm:$0xff]
    %v74 = vld [vmem:[%s1 + $0x130] sm:$0xff]
    %v75 = vld [vmem:[%s1 + $0x138] sm:$0xff]
    %v76 = vld [vmem:[%s1 + $0x140] sm:$0xff]
    %v77 = vld [vmem:[%s1 + $0x148] sm:$0xff]
    %v78 = vld [vmem:[%s1 + $0x150] sm:$0xff]
    %v79 = vld [vmem:[%s1 + $0x158] sm:$0xff]
    %v80 = vld [vmem:[%s1 + $0x160] sm:$0xff]
    %v81 = vld [vmem:[%s1 + $0x168] sm:$0xff]
    %v82 = vld [vmem:[%s1 + $0x170] sm:$0xff]
    %v83 = vld [vmem:[%s1 + $0x178] sm:$0xff]
    %v84 = vld [vmem:[%s1 + $0x180] sm:$0xff]
    %v85 = vld [vmem:[%s1 + $0x188] sm:$0xff]
    %v86 = vld [vmem:[%s1 + $0x190] sm:$0xff]
    %v87 = vld [vmem:[%s1 + $0x198] sm:$0xff]
    %v88 = vld [vmem:[%s1 + $0x1a0] sm:$0xff]
    %v89 = vld [vmem:[%s1 + $0x1a8] sm:$0xff]
    %v90 = vld [vmem:[%s1 + $0x1b0] sm:$0xff]
    %v91 = vld [vmem:[%s1 + $0x1b8] sm:$0xff]
    %v92 = vld [vmem:[%s1 + $0x1c0] sm:$0xff]
    %v93 = vld [vmem:[%s1 + $0x1c8] sm:$0xff]
    %v94 = vld [vmem:[%s1 + $0x1d0] sm:$0xff]
    %v95 = vld [vmem:[%s1 + $0x1d8] sm:$0xff]
    %v96 = vld [vmem:[%s1 + $0x1e0] sm:$0xff]
    %v97 = vld [vmem:[%s1 + $0x1e8] sm:$0xff]
    %v98 = vld [vmem:[%s1 + $0x1f0] sm:$0xff]
    %v99 = vld [vmem:[%s1 + $0x1f8] sm:$0xff]
    %v100 = vld [vmem:[%s1 + $0x200] sm:$0xff]
    %v101 = vld [vmem:[%s1 + $0x208] sm:$0xff]
    %v102 = vld [vmem:[%s1 + $0x210] sm:$0xff]
    %v103 = vld [vmem:[%s1 + $0x218] sm:$0xff]
    %v104 = vld [vmem:[%s1 + $0x220] sm:$0xff]
    %v105 = vld [vmem:[%s1 + $0x228] sm:$0xff]
    %v106 = vld [vmem:[%s1 + $0x230] sm:$0xff]
    %v107 = vld [vmem:[%s1 + $0x238] sm:$0xff]
    %v108 = vld [vmem:[%s1 + $0x240] sm:$0xff]
    %v109 = vld [vmem:[%s1 + $0x248] sm:$0xff]
    %v110 = vld [vmem:[%s1 + $0x250] sm:$0xff]
    %v111 = vld [vmem:[%s1 + $0x258] sm:$0xff]
    %v112 = vld [vmem:[%s1 + $0x260] sm:$0xff]
    %v113 = vld [vmem:[%s1 + $0x268] sm:$0xff]
    %v114 = vld [vmem:[%s1 + $0x270] sm:$0xff]
    %v115 = vld [vmem:[%s1 + $0x278] sm:$0xff]
    %v116 = vld [vmem:[%s1 + $0x280] sm:$0xff]
    %v117 = vld [vmem:[%s1 + $0x288] sm:$0xff]
    %v118 = vld [vmem:[%s1 + $0x290] sm:$0xff]
    %v119 = vld [vmem:[%s1 + $0x298] sm:$0xff]
    %v120 = vld [vmem:[%s1 + $0x2a0] sm:$0xff]
    %v121 = vld [vmem:[%s1 + $0x2a8] sm:$0xff]
    %v122 = vld [vmem:[%s1 + $0x2b0] sm:$0xff]
    %v123 = vld [vmem:[%s1 + $0x2b8] sm:$0xff]
    %v124 = vld [vmem:[%s1 + $0x2c0] sm:$0xff]
    %v125 = vld [vmem:[%s1 + $0x2c8] sm:$0xff]
    %v126 = vld [vmem:[%s1 + $0x2d0] sm:$0xff]
    %v127 = vld [vmem:[%s1 + $0x2d8] sm:$0xff]
    %v128 = vld [vmem:[%s1 + $0x2e0] sm:$0xff]
    %v129 = vld [vmem:[%s1 + $0x2e8] sm:$0xff]
    %v130 = vld [vmem:[%s1 + $0x2f0] sm:$0xff]
    %v131 = vld [vmem:[%s1 + $0x2f8] sm:$0xff]
    %v132 = vld [vmem:[%s1 + $0x300] sm:$0xff]
    %v133 = vld [vmem:[%s1 + $0x308] sm:$0xff]
    %v134 = vld [vmem:[%s1 + $0x310] sm:$0xff]
    %v135 = vld [vmem:[%s1 + $0x318] sm:$0xff]
    %v136 = vld [vmem:[%s1 + $0x320] sm:$0xff]
    %v137 = vld [vmem:[%s1 + $0x328] sm:$0xff]
    %v138 = vld [vmem:[%s1 + $0x330] sm:$0xff]
    %v139 = vld [vmem:[%s1 + $0x338] sm:$0xff]
    %v140 = vld [vmem:[%s1 + $0x340] sm:$0xff]
    %v141 = vld [vmem:[%s1 + $0x348] sm:$0xff]
    %v142 = vld [vmem:[%s1 + $0x350] sm:$0xff]
    %v143 = vld [vmem:[%s1 + $0x358] sm:$0xff]
    %v144 = vld [vmem:[%s1 + $0x360] sm:$0xff]
    %v145 = vld [vmem:[%s1 + $0x368] sm:$0xff]
    %v146 = vld [vmem:[%s1 + $0x370] sm:$0xff]
    %v147 = vld [vmem:[%s1 + $0x378] sm:$0xff]
    %v148 = vld [vmem:[%s1 + $0x380] sm:$0xff]
    %v149 = vld [vmem:[%s1 + $0x388] sm:$0xff]
    %v150 = vld [vmem:[%s1 + $0x390] sm:$0xff]
    %v151 = vld [vmem:[%s1 + $0x398] sm:$0xff]
    %v152 = vld [vmem:[%s1 + $0x3a0] sm:$0xff]
    %v153 = vld [vmem:[%s1 + $0x3a8] sm:$0xff]
    %v154 = vld [vmem:[%s1 + $0x3b0] sm:$0xff]
    %v155 = vld [vmem:[%s1 + $0x3b8] sm:$0xff]
    %v156 = vld [vmem:[%s1 + $0x3c0] sm:$0xff]
    %v157 = vld [vmem:[%s1 + $0x3c8] sm:$0xff]
    %v158 = vld [vmem:[%s1 + $0x3d0] sm:$0xff]
    %v159 = vld [vmem:[%s1 + $0x3d8] sm:$0xff]
    %v160 = vld [vmem:[%s1 + $0x3e0] sm:$0xff]
    %v161 = vld [vmem:[%s1 + $0x3e8] sm:$0xff]
    %v162 = vld [vmem:[%s1 + $0x3f0] sm:$0xff]
    %v163 = vld [vmem:[%s1 + $0x3f8] sm:$0xff]
    %v164 = vld [vmem:[%s1 + $0x400] sm:$0xff]
    %v165 = vld [vmem:[%s1 + $0x408] sm:$0xff]
    %v166 = vld [vmem:[%s1 + $0x410] sm:$0xff]
    %v167 = vld [vmem:[%s1 + $0x418] sm:$0xff]
    %v168 = vld [vmem:[%s1 + $0x420] sm:$0xff]
    %v169 = vld [vmem:[%s1 + $0x428] sm:$0xff]
    %v170 = vld [vmem:[%s1 + $0x430] sm:$0xff]
    %v171 = vld [vmem:[%s1 + $0x438] sm:$0xff]
    %v172 = vld [vmem:[%s1 + $0x440] sm:$0xff]
    %v173 = vld [vmem:[%s1 + $0x448] sm:$0xff]
    %v174 = vld [vmem:[%s1 + $0x450] sm:$0xff]
    %v175 = vld [vmem:[%s1 + $0x458] sm:$0xff]
    %v176 = vld [vmem:[%s1 + $0x460] sm:$0xff]
    %v177 = vld [vmem:[%s1 + $0x468] sm:$0xff]
    %v178 = vld [vmem:[%s1 + $0x470] sm:$0xff]
    %v179 = vld [vmem:[%s1 + $0x478] sm:$0xff]
    %v180 = vld [vmem:[%s1 + $0x480] sm:$0xff]
    %v181 = vld [vmem:[%s1 + $0x488] sm:$0xff]
    %v182 = vld [vmem:[%s1 + $0x490] sm:$0xff]
    %v183 = vld [vmem:[%s1 + $0x498] sm:$0xff]
    %v184 = vld [vmem:[%s1 + $0x4a0] sm:$0xff]
    %v185 = vld [vmem:[%s1 + $0x4a8] sm:$0xff]
    %v186 = vld [vmem:[%s1 + $0x4b0] sm:$0xff]
    %v187 = vld [vmem:[%s1 + $0x4b8] sm:$0xff]
    %v188 = vld [vmem:[%s1 + $0x4c0] sm:$0xff]
    %v189 = vld [vmem:[%s1 + $0x4c8] sm:$0xff]
    %v190 = vld [vmem:[%s1 + $0x4d0] sm:$0xff]
    %v191 = vld [vmem:[%s1 + $0x4d8] sm:$0xff]
    %v192 = vld [vmem:[%s1 + $0x4e0] sm:$0xff]
    %v193 = vld [vmem:[%s1 + $0x4e8] sm:$0xff]
    %v194 = vld [vmem:[%s1 + $0x4f0] sm:$0xff]
    %v195 = vld [vmem:[%s1 + $0x4f8] sm:$0xff]
    %v196 = vld [vmem:[%s1 + $0x500] sm:$0xff]
    %v197 = vld [vmem:[%s1 + $0x508] sm:$0xff]
    %v198 = vld [vmem:[%s1 + $0x510] sm:$0xff]
    %v199 = vld [vmem:[%s1 + $0x518] sm:$0xff]
    %v200 = vld [vmem:[%s1 + $0x520] sm:$0xff]
    %v201 = vld [vmem:[%s1 + $0x528] sm:$0xff]
    %v202 = vld [vmem:[%s1 + $0x530] sm:$0xff]
    %v203 = vld [vmem:[%s1 + $0x538] sm:$0xff]
    %v204 = vld [vmem:[%s1 + $0x540] sm:$0xff]
    %v205 = vld [vmem:[%s1 + $0x548] sm:$0xff]
    %v206 = vld [vmem:[%s1 + $0x550] sm:$0xff]
    %v207 = vld [vmem:[%s1 + $0x558] sm:$0xff]
    %v208 = vld [vmem:[%s1 + $0x560] sm:$0xff]
    %v209 = vld [vmem:[%s1 + $0x568] sm:$0xff]
    %v210 = vld [vmem:[%s1 + $0x570] sm:$0xff]
    %v211 = vld [vmem:[%s1 + $0x578] sm:$0xff]
    %v212 = vld [vmem:[%s1 + $0x580] sm:$0xff]
    %v213 = vld [vmem:[%s1 + $0x588] sm:$0xff]
    %v214 = vld [vmem:[%s1 + $0x590] sm:$0xff]
    %v215 = vld [vmem:[%s1 + $0x598] sm:$0xff]
    %v216 = vld [vmem:[%s1 + $0x5a0] sm:$0xff]
    %v217 = vld [vmem:[%s1 + $0x5a8] sm:$0xff]
    %v218 = vld [vmem:[%s1 + $0x5b0] sm:$0xff]
    %v219 = vld [vmem:[%s1 + $0x5b8] sm:$0xff]
    %v220 = vld [vmem:[%s1 + $0x5c0] sm:$0xff]
    %v221 = vld [vmem:[%s1 + $0x5c8] sm:$0xff]
    %v222 = vld [vmem:[%s1 + $0x5d0] sm:$0xff]
    %v223 = vld [vmem:[%s1 + $0x5d8] sm:$0xff]
    %v224 = vld [vmem:[%s1 + $0x5e0] sm:$0xff]
    %v225 = vld [vmem:[%s1 + $0x5e8] sm:$0xff]
    %v226 = vld [vmem:[%s1 + $0x5f0] sm:$0xff]
    %v227 = vld [vmem:[%s1 + $0x5f8] sm:$0xff]
    %v228 = vld [vmem:[%s1 + $0x600] sm:$0xff]
    %v229 = vld [vmem:[%s1 + $0x608] sm:$0xff]
    %v230 = vld [vmem:[%s1 + $0x610] sm:$0xff]
    %v231 = vld [vmem:[%s1 + $0x618] sm:$0xff]
    %v232 = vld [vmem:[%s1 + $0x620] sm:$0xff]
    %v233 = vld [vmem:[%s1 + $0x628] sm:$0xff]
    %v234 = vld [vmem:[%s1 + $0x630] sm:$0xff]
    %v235 = vld [vmem:[%s1 + $0x638] sm:$0xff]
    %v236 = vld [vmem:[%s1 + $0x640] sm:$0xff]
    %v237 = vld [vmem:[%s1 + $0x648] sm:$0xff]
    %v238 = vld [vmem:[%s1 + $0x650] sm:$0xff]
    %v239 = vld [vmem:[%s1 + $0x658] sm:$0xff]
    %v240 = vld [vmem:[%s1 + $0x660] sm:$0xff]
    %v241 = vld [vmem:[%s1 + $0x668] sm:$0xff]
    %v242 = vld [vmem:[%s1 + $0x670] sm:$0xff]
    %v243 = vld [vmem:[%s1 + $0x678] sm:$0xff]
    %v244 = vld [vmem:[%s1 + $0x680] sm:$0xff]
    %v245 = vld [vmem:[%s1 + $0x688] sm:$0xff]
    %v246 = vld [vmem:[%s1 + $0x690] sm:$0xff]
    %v247 = vld [vmem:[%s1 + $0x698] sm:$0xff]
    %v248 = vld [vmem:[%s1 + $0x6a0] sm:$0xff]
    %v249 = vld [vmem:[%s1 + $0x6a8] sm:$0xff]
    %v250 = vld [vmem:[%s1 + $0x6b0] sm:$0xff]
    %v251 = vld [vmem:[%s1 + $0x6b8] sm:$0xff]
    %v252 = vld [vmem:[%s1 + $0x6c0] sm:$0xff]
    %v253 = vld [vmem:[%s1 + $0x6c8] sm:$0xff]
    %v254 = vld [vmem:[%s1 + $0x6d0] sm:$0xff]
    %v255 = vld [vmem:[%s1 + $0x6d8] sm:$0xff]
    %v256 = vld [vmem:[%s1 + $0x6e0] sm:$0xff]
    %v257 = vld [vmem:[%s1 + $0x6e8] sm:$0xff]
    %v258 = vld [vmem:[%s1 + $0x6f0] sm:$0xff]
    %v259 = vld [vmem:[%s1 + $0x6f8] sm:$0xff]
    %v260 = vld [vmem:[%s1 + $0x700] sm:$0xff]
    %v261 = vld [vmem:[%s1 + $0x708] sm:$0xff]
    %v262 = vld [vmem:[%s1 + $0x710] sm:$0xff]
    %v263 = vld [vmem:[%s1 + $0x718] sm:$0xff]
    %v264 = vld [vmem:[%s1 + $0x720] sm:$0xff]
    %v265 = vld [vmem:[%s1 + $0x728] sm:$0xff]
    %v266 = vld [vmem:[%s1 + $0x730] sm:$0xff]
    %v267 = vld [vmem:[%s1 + $0x738] sm:$0xff]
    %v268 = vld [vmem:[%s1 + $0x740] sm:$0xff]
    %v269 = vld [vmem:[%s1 + $0x748] sm:$0xff]
    %v270 = vld [vmem:[%s1 + $0x750] sm:$0xff]
    %v271 = vld [vmem:[%s1 + $0x758] sm:$0xff]
    %v272 = vld [vmem:[%s1 + $0x760] sm:$0xff]
    %v273 = vld [vmem:[%s1 + $0x768] sm:$0xff]
    %v274 = vld [vmem:[%s1 + $0x770] sm:$0xff]
    %v275 = vld [vmem:[%s1 + $0x778] sm:$0xff]
    %v276 = vld [vmem:[%s2] sm:$0x1]
    %v278 = vlaneseq
    %v279 = vshrl.u32 %v278, 7
    %v280 = vsub.s32 0, %v279
    %v281 = vrot.slane %v276, %v280
    %283 = vmatprep.subr.mxu0 0.0
    %284 = vmatpush1.msra.mxu0 %v51
    %285 = vmatprep.subr.mxu0 0.0
    %286 = vmatpush1.msra.mxu0 %v50
    %287 = vmatprep.subr.mxu0 0.0
    %288 = vmatpush1.msra.mxu0 %v49
    %289 = vmatprep.subr.mxu0 0.0
    %290 = vmatpush1.msra.mxu0 %v48
    %291 = vmatprep.subr.mxu0 0.0
    %292 = vmatpush1.msra.mxu0 %v47
    %293 = vmatprep.subr.mxu0 0.0
    %294 = vmatpush1.msra.mxu0 %v46
    %295 = vmatprep.subr.mxu0 0.0
    %296 = vmatpush1.msra.mxu0 %v45
    %297 = vmatprep.subr.mxu0 0.0
    %298 = vmatpush1.msra.mxu0 %v44
    %299 = vmatprep.subr.mxu0 0.0
    %300 = vmatpush1.msra.mxu0 %v43
    %301 = vmatprep.subr.mxu0 0.0
    %302 = vmatpush1.msra.mxu0 %v42
    %303 = vmatprep.subr.mxu0 0.0
    %304 = vmatpush1.msra.mxu0 %v41
    %305 = vmatprep.subr.mxu0 0.0
    %306 = vmatpush1.msra.mxu0 %v40
    %307 = vmatprep.subr.mxu0 0.0
    %308 = vmatpush1.msra.mxu0 %v39
    %309 = vmatprep.subr.mxu0 0.0
    %310 = vmatpush1.msra.mxu0 %v38
    %311 = vmatprep.subr.mxu0 0.0
    %312 = vmatpush1.msra.mxu0 %v37
    %313 = vmatprep.subr.mxu0 0.0
    %314 = vmatpush1.msra.mxu0 %v36
    %315 = vmatprep.subr.mxu0 0.0
    %316 = vmatpush2.msra.mxu0 %v67
    %317 = vmatprep.subr.mxu0 0.0
    %318 = vmatpush2.msra.mxu0 %v66
    %319 = vmatprep.subr.mxu0 0.0
    %320 = vmatpush2.msra.mxu0 %v65
    %321 = vmatprep.subr.mxu0 0.0
    %322 = vmatpush2.msra.mxu0 %v64
    %323 = vmatprep.subr.mxu0 0.0
    %324 = vmatpush2.msra.mxu0 %v63
    %325 = vmatprep.subr.mxu0 0.0
    %326 = vmatpush2.msra.mxu0 %v62
    %327 = vmatprep.subr.mxu0 0.0
    %328 = vmatpush2.msra.mxu0 %v61
    %329 = vmatprep.subr.mxu0 0.0
    %330 = vmatpush2.msra.mxu0 %v60
    %331 = vmatprep.subr.mxu0 0.0
    %332 = vmatpush2.msra.mxu0 %v59
    %333 = vmatprep.subr.mxu0 0.0
    %334 = vmatpush2.msra.mxu0 %v58
    %335 = vmatprep.subr.mxu0 0.0
    %336 = vmatpush2.msra.mxu0 %v57
    %337 = vmatprep.subr.mxu0 0.0
    %338 = vmatpush2.msra.mxu0 %v56
    %339 = vmatprep.subr.mxu0 0.0
    %340 = vmatpush2.msra.mxu0 %v55
    %341 = vmatprep.subr.mxu0 0.0
    %342 = vmatpush2.msra.mxu0 %v54
    %343 = vmatprep.subr.mxu0 0.0
    %344 = vmatpush2.msra.mxu0 %v53
    %345 = vmatprep.subr.mxu0 0.0
    %346 = vmatpush2.msra.mxu0 %v52
    %347 = vmatprep.mubr.f32.mxu0 %v22
    %348 = vmatmul.mubr.f32.gmra.mxu0 %v21
    %v349 = vpop.f32.mrf.mxu0
    %v350 = vadd.f32 %v281, %v349
    %v351 = vpop.f32.mrf.mxu0
    %352 = vdwg.mxu0
    %353 = vmatprep.subr.mxu0 0.0
    %354 = vmatpush1.msra.mxu0 %v83
    %355 = vmatprep.subr.mxu0 0.0
    %356 = vmatpush1.msra.mxu0 %v82
    %357 = vmatprep.subr.mxu0 0.0
    %358 = vmatpush1.msra.mxu0 %v81
    %359 = vmatprep.subr.mxu0 0.0
    %360 = vmatpush1.msra.mxu0 %v80
    %361 = vmatprep.subr.mxu0 0.0
    %362 = vmatpush1.msra.mxu0 %v79
    %363 = vmatprep.subr.mxu0 0.0
    %364 = vmatpush1.msra.mxu0 %v78
    %365 = vmatprep.subr.mxu0 0.0
    %366 = vmatpush1.msra.mxu0 %v77
    %367 = vmatprep.subr.mxu0 0.0
    %368 = vmatpush1.msra.mxu0 %v76
    %369 = vmatprep.subr.mxu0 0.0
    %370 = vmatpush1.msra.mxu0 %v75
    %371 = vmatprep.subr.mxu0 0.0
    %372 = vmatpush1.msra.mxu0 %v74
    %373 = vmatprep.subr.mxu0 0.0
    %374 = vmatpush1.msra.mxu0 %v73
    %375 = vmatprep.subr.mxu0 0.0
    %376 = vmatpush1.msra.mxu0 %v72
    %377 = vmatprep.subr.mxu0 0.0
    %378 = vmatpush1.msra.mxu0 %v71
    %379 = vmatprep.subr.mxu0 0.0
    %380 = vmatpush1.msra.mxu0 %v70
    %381 = vmatprep.subr.mxu0 0.0
    %382 = vmatpush1.msra.mxu0 %v69
    %383 = vmatprep.subr.mxu0 0.0
    %384 = vmatpush1.msra.mxu0 %v68
    %385 = vmatprep.subr.mxu0 0.0
    %386 = vmatpush2.msra.mxu0 %v99
    %387 = vmatprep.subr.mxu0 0.0
    %388 = vmatpush2.msra.mxu0 %v98
    %389 = vmatprep.subr.mxu0 0.0
    %390 = vmatpush2.msra.mxu0 %v97
    %391 = vmatprep.subr.mxu0 0.0
    %392 = vmatpush2.msra.mxu0 %v96
    %393 = vmatprep.subr.mxu0 0.0
    %394 = vmatpush2.msra.mxu0 %v95
    %395 = vmatprep.subr.mxu0 0.0
    %396 = vmatpush2.msra.mxu0 %v94
    %397 = vmatprep.subr.mxu0 0.0
    %398 = vmatpush2.msra.mxu0 %v93
    %399 = vmatprep.subr.mxu0 0.0
    %400 = vmatpush2.msra.mxu0 %v92
    %401 = vmatprep.subr.mxu0 0.0
    %402 = vmatpush2.msra.mxu0 %v91
    %403 = vmatprep.subr.mxu0 0.0
    %404 = vmatpush2.msra.mxu0 %v90
    %405 = vmatprep.subr.mxu0 0.0
    %406 = vmatpush2.msra.mxu0 %v89
    %407 = vmatprep.subr.mxu0 0.0
    %408 = vmatpush2.msra.mxu0 %v88
    %409 = vmatprep.subr.mxu0 0.0
    %410 = vmatpush2.msra.mxu0 %v87
    %411 = vmatprep.subr.mxu0 0.0
    %412 = vmatpush2.msra.mxu0 %v86
    %413 = vmatprep.subr.mxu0 0.0
    %414 = vmatpush2.msra.mxu0 %v85
    %415 = vmatprep.subr.mxu0 0.0
    %416 = vmatpush2.msra.mxu0 %v84
    %417 = vmatprep.mubr.f32.mxu0 %v24
    %418 = vmatmul.mubr.f32.gmra.mxu0 %v23
    %v419 = vpop.f32.mrf.mxu0
    %v420 = vadd.f32 %v350, %v419
    %v421 = vpop.f32.mrf.mxu0
    %422 = vdwg.mxu0
    %423 = vmatprep.subr.mxu0 0.0
    %424 = vmatpush1.msra.mxu0 %v115
    %425 = vmatprep.subr.mxu0 0.0
    %426 = vmatpush1.msra.mxu0 %v114
    %427 = vmatprep.subr.mxu0 0.0
    %428 = vmatpush1.msra.mxu0 %v113
    %429 = vmatprep.subr.mxu0 0.0
    %430 = vmatpush1.msra.mxu0 %v112
    %431 = vmatprep.subr.mxu0 0.0
    %432 = vmatpush1.msra.mxu0 %v111
    %433 = vmatprep.subr.mxu0 0.0
    %434 = vmatpush1.msra.mxu0 %v110
    %435 = vmatprep.subr.mxu0 0.0
    %436 = vmatpush1.msra.mxu0 %v109
    %437 = vmatprep.subr.mxu0 0.0
    %438 = vmatpush1.msra.mxu0 %v108
    %439 = vmatprep.subr.mxu0 0.0
    %440 = vmatpush1.msra.mxu0 %v107
    %441 = vmatprep.subr.mxu0 0.0
    %442 = vmatpush1.msra.mxu0 %v106
    %443 = vmatprep.subr.mxu0 0.0
    %444 = vmatpush1.msra.mxu0 %v105
    %445 = vmatprep.subr.mxu0 0.0
    %446 = vmatpush1.msra.mxu0 %v104
    %447 = vmatprep.subr.mxu0 0.0
    %448 = vmatpush1.msra.mxu0 %v103
    %449 = vmatprep.subr.mxu0 0.0
    %450 = vmatpush1.msra.mxu0 %v102
    %451 = vmatprep.subr.mxu0 0.0
    %452 = vmatpush1.msra.mxu0 %v101
    %453 = vmatprep.subr.mxu0 0.0
    %454 = vmatpush1.msra.mxu0 %v100
    %455 = vmatprep.subr.mxu0 0.0
    %456 = vmatpush2.msra.mxu0 %v131
    %457 = vmatprep.subr.mxu0 0.0
    %458 = vmatpush2.msra.mxu0 %v130
    %459 = vmatprep.subr.mxu0 0.0
    %460 = vmatpush2.msra.mxu0 %v129
    %461 = vmatprep.subr.mxu0 0.0
    %462 = vmatpush2.msra.mxu0 %v128
    %463 = vmatprep.subr.mxu0 0.0
    %464 = vmatpush2.msra.mxu0 %v127
    %465 = vmatprep.subr.mxu0 0.0
    %466 = vmatpush2.msra.mxu0 %v126
    %467 = vmatprep.subr.mxu0 0.0
    %468 = vmatpush2.msra.mxu0 %v125
    %469 = vmatprep.subr.mxu0 0.0
    %470 = vmatpush2.msra.mxu0 %v124
    %471 = vmatprep.subr.mxu0 0.0
    %472 = vmatpush2.msra.mxu0 %v123
    %473 = vmatprep.subr.mxu0 0.0
    %474 = vmatpush2.msra.mxu0 %v122
    %475 = vmatprep.subr.mxu0 0.0
    %476 = vmatpush2.msra.mxu0 %v121
    %477 = vmatprep.subr.mxu0 0.0
    %478 = vmatpush2.msra.mxu0 %v120
    %479 = vmatprep.subr.mxu0 0.0
    %480 = vmatpush2.msra.mxu0 %v119
    %481 = vmatprep.subr.mxu0 0.0
    %482 = vmatpush2.msra.mxu0 %v118
    %483 = vmatprep.subr.mxu0 0.0
    %484 = vmatpush2.msra.mxu0 %v117
    %485 = vmatprep.subr.mxu0 0.0
    %486 = vmatpush2.msra.mxu0 %v116
    %487 = vmatprep.mubr.f32.mxu0 %v26
    %488 = vmatmul.mubr.f32.gmra.mxu0 %v25
    %v489 = vpop.f32.mrf.mxu0
    %v490 = vadd.f32 %v420, %v489
    %v491 = vpop.f32.mrf.mxu0
    %492 = vdwg.mxu0
    %493 = vmatprep.subr.mxu0 0.0
    %494 = vmatpush1.msra.mxu0 %v147
    %495 = vmatprep.subr.mxu0 0.0
    %496 = vmatpush1.msra.mxu0 %v146
    %497 = vmatprep.subr.mxu0 0.0
    %498 = vmatpush1.msra.mxu0 %v145
    %499 = vmatprep.subr.mxu0 0.0
    %500 = vmatpush1.msra.mxu0 %v144
    %501 = vmatprep.subr.mxu0 0.0
    %502 = vmatpush1.msra.mxu0 %v143
    %503 = vmatprep.subr.mxu0 0.0
    %504 = vmatpush1.msra.mxu0 %v142
    %505 = vmatprep.subr.mxu0 0.0
    %506 = vmatpush1.msra.mxu0 %v141
    %507 = vmatprep.subr.mxu0 0.0
    %508 = vmatpush1.msra.mxu0 %v140
    %509 = vmatprep.subr.mxu0 0.0
    %510 = vmatpush1.msra.mxu0 %v139
    %511 = vmatprep.subr.mxu0 0.0
    %512 = vmatpush1.msra.mxu0 %v138
    %513 = vmatprep.subr.mxu0 0.0
    %514 = vmatpush1.msra.mxu0 %v137
    %515 = vmatprep.subr.mxu0 0.0
    %516 = vmatpush1.msra.mxu0 %v136
    %517 = vmatprep.subr.mxu0 0.0
    %518 = vmatpush1.msra.mxu0 %v135
    %519 = vmatprep.subr.mxu0 0.0
    %520 = vmatpush1.msra.mxu0 %v134
    %521 = vmatprep.subr.mxu0 0.0
    %522 = vmatpush1.msra.mxu0 %v133
    %523 = vmatprep.subr.mxu0 0.0
    %524 = vmatpush1.msra.mxu0 %v132
    %525 = vmatprep.subr.mxu0 0.0
    %526 = vmatpush2.msra.mxu0 %v163
    %527 = vmatprep.subr.mxu0 0.0
    %528 = vmatpush2.msra.mxu0 %v162
    %529 = vmatprep.subr.mxu0 0.0
    %530 = vmatpush2.msra.mxu0 %v161
    %531 = vmatprep.subr.mxu0 0.0
    %532 = vmatpush2.msra.mxu0 %v160
    %533 = vmatprep.subr.mxu0 0.0
    %534 = vmatpush2.msra.mxu0 %v159
    %535 = vmatprep.subr.mxu0 0.0
    %536 = vmatpush2.msra.mxu0 %v158
    %537 = vmatprep.subr.mxu0 0.0
    %538 = vmatpush2.msra.mxu0 %v157
    %539 = vmatprep.subr.mxu0 0.0
    %540 = vmatpush2.msra.mxu0 %v156
    %541 = vmatprep.subr.mxu0 0.0
    %542 = vmatpush2.msra.mxu0 %v155
    %543 = vmatprep.subr.mxu0 0.0
    %544 = vmatpush2.msra.mxu0 %v154
    %545 = vmatprep.subr.mxu0 0.0
    %546 = vmatpush2.msra.mxu0 %v153
    %547 = vmatprep.subr.mxu0 0.0
    %548 = vmatpush2.msra.mxu0 %v152
    %549 = vmatprep.subr.mxu0 0.0
    %550 = vmatpush2.msra.mxu0 %v151
    %551 = vmatprep.subr.mxu0 0.0
    %552 = vmatpush2.msra.mxu0 %v150
    %553 = vmatprep.subr.mxu0 0.0
    %554 = vmatpush2.msra.mxu0 %v149
    %555 = vmatprep.subr.mxu0 0.0
    %556 = vmatpush2.msra.mxu0 %v148
    %557 = vmatprep.mubr.f32.mxu0 %v28
    %558 = vmatmul.mubr.f32.gmra.mxu0 %v27
    %v559 = vpop.f32.mrf.mxu0
    %v560 = vadd.f32 %v490, %v559
    %v561 = vpop.f32.mrf.mxu0
    %562 = vdwg.mxu0
    %563 = vmatprep.subr.mxu0 0.0
    %564 = vmatpush1.msra.mxu0 %v179
    %565 = vmatprep.subr.mxu0 0.0
    %566 = vmatpush1.msra.mxu0 %v178
    %567 = vmatprep.subr.mxu0 0.0
    %568 = vmatpush1.msra.mxu0 %v177
    %569 = vmatprep.subr.mxu0 0.0
    %570 = vmatpush1.msra.mxu0 %v176
    %571 = vmatprep.subr.mxu0 0.0
    %572 = vmatpush1.msra.mxu0 %v175
    %573 = vmatprep.subr.mxu0 0.0
    %574 = vmatpush1.msra.mxu0 %v174
    %575 = vmatprep.subr.mxu0 0.0
    %576 = vmatpush1.msra.mxu0 %v173
    %577 = vmatprep.subr.mxu0 0.0
    %578 = vmatpush1.msra.mxu0 %v172
    %579 = vmatprep.subr.mxu0 0.0
    %580 = vmatpush1.msra.mxu0 %v171
    %581 = vmatprep.subr.mxu0 0.0
    %582 = vmatpush1.msra.mxu0 %v170
    %583 = vmatprep.subr.mxu0 0.0
    %584 = vmatpush1.msra.mxu0 %v169
    %585 = vmatprep.subr.mxu0 0.0
    %586 = vmatpush1.msra.mxu0 %v168
    %587 = vmatprep.subr.mxu0 0.0
    %588 = vmatpush1.msra.mxu0 %v167
    %589 = vmatprep.subr.mxu0 0.0
    %590 = vmatpush1.msra.mxu0 %v166
    %591 = vmatprep.subr.mxu0 0.0
    %592 = vmatpush1.msra.mxu0 %v165
    %593 = vmatprep.subr.mxu0 0.0
    %594 = vmatpush1.msra.mxu0 %v164
    %595 = vmatprep.subr.mxu0 0.0
    %596 = vmatpush2.msra.mxu0 %v195
    %597 = vmatprep.subr.mxu0 0.0
    %598 = vmatpush2.msra.mxu0 %v194
    %599 = vmatprep.subr.mxu0 0.0
    %600 = vmatpush2.msra.mxu0 %v193
    %601 = vmatprep.subr.mxu0 0.0
    %602 = vmatpush2.msra.mxu0 %v192
    %603 = vmatprep.subr.mxu0 0.0
    %604 = vmatpush2.msra.mxu0 %v191
    %605 = vmatprep.subr.mxu0 0.0
    %606 = vmatpush2.msra.mxu0 %v190
    %607 = vmatprep.subr.mxu0 0.0
    %608 = vmatpush2.msra.mxu0 %v189
    %609 = vmatprep.subr.mxu0 0.0
    %610 = vmatpush2.msra.mxu0 %v188
    %611 = vmatprep.subr.mxu0 0.0
    %612 = vmatpush2.msra.mxu0 %v187
    %613 = vmatprep.subr.mxu0 0.0
    %614 = vmatpush2.msra.mxu0 %v186
    %615 = vmatprep.subr.mxu0 0.0
    %616 = vmatpush2.msra.mxu0 %v185
    %617 = vmatprep.subr.mxu0 0.0
    %618 = vmatpush2.msra.mxu0 %v184
    %619 = vmatprep.subr.mxu0 0.0
    %620 = vmatpush2.msra.mxu0 %v183
    %621 = vmatprep.subr.mxu0 0.0
    %622 = vmatpush2.msra.mxu0 %v182
    %623 = vmatprep.subr.mxu0 0.0
    %624 = vmatpush2.msra.mxu0 %v181
    %625 = vmatprep.subr.mxu0 0.0
    %626 = vmatpush2.msra.mxu0 %v180
    %627 = vmatprep.mubr.f32.mxu0 %v30
    %628 = vmatmul.mubr.f32.gmra.mxu0 %v29
    %v629 = vpop.f32.mrf.mxu0
    %v630 = vadd.f32 %v560, %v629
    %v631 = vpop.f32.mrf.mxu0
    %632 = vdwg.mxu0
    %633 = vmatprep.subr.mxu0 0.0
    %634 = vmatpush1.msra.mxu0 %v211
    %635 = vmatprep.subr.mxu0 0.0
    %636 = vmatpush1.msra.mxu0 %v210
    %637 = vmatprep.subr.mxu0 0.0
    %638 = vmatpush1.msra.mxu0 %v209
    %639 = vmatprep.subr.mxu0 0.0
    %640 = vmatpush1.msra.mxu0 %v208
    %641 = vmatprep.subr.mxu0 0.0
    %642 = vmatpush1.msra.mxu0 %v207
    %643 = vmatprep.subr.mxu0 0.0
    %644 = vmatpush1.msra.mxu0 %v206
    %645 = vmatprep.subr.mxu0 0.0
    %646 = vmatpush1.msra.mxu0 %v205
    %647 = vmatprep.subr.mxu0 0.0
    %648 = vmatpush1.msra.mxu0 %v204
    %649 = vmatprep.subr.mxu0 0.0
    %650 = vmatpush1.msra.mxu0 %v203
    %651 = vmatprep.subr.mxu0 0.0
    %652 = vmatpush1.msra.mxu0 %v202
    %653 = vmatprep.subr.mxu0 0.0
    %654 = vmatpush1.msra.mxu0 %v201
    %655 = vmatprep.subr.mxu0 0.0
    %656 = vmatpush1.msra.mxu0 %v200
    %657 = vmatprep.subr.mxu0 0.0
    %658 = vmatpush1.msra.mxu0 %v199
    %659 = vmatprep.subr.mxu0 0.0
    %660 = vmatpush1.msra.mxu0 %v198
    %661 = vmatprep.subr.mxu0 0.0
    %662 = vmatpush1.msra.mxu0 %v197
    %663 = vmatprep.subr.mxu0 0.0
    %664 = vmatpush1.msra.mxu0 %v196
    %665 = vmatprep.subr.mxu0 0.0
    %666 = vmatpush2.msra.mxu0 %v227
    %667 = vmatprep.subr.mxu0 0.0
    %668 = vmatpush2.msra.mxu0 %v226
    %669 = vmatprep.subr.mxu0 0.0
    %670 = vmatpush2.msra.mxu0 %v225
    %671 = vmatprep.subr.mxu0 0.0
    %672 = vmatpush2.msra.mxu0 %v224
    %673 = vmatprep.subr.mxu0 0.0
    %674 = vmatpush2.msra.mxu0 %v223
    %675 = vmatprep.subr.mxu0 0.0
    %676 = vmatpush2.msra.mxu0 %v222
    %677 = vmatprep.subr.mxu0 0.0
    %678 = vmatpush2.msra.mxu0 %v221
    %679 = vmatprep.subr.mxu0 0.0
    %680 = vmatpush2.msra.mxu0 %v220
    %681 = vmatprep.subr.mxu0 0.0
    %682 = vmatpush2.msra.mxu0 %v219
    %683 = vmatprep.subr.mxu0 0.0
    %684 = vmatpush2.msra.mxu0 %v218
    %685 = vmatprep.subr.mxu0 0.0
    %686 = vmatpush2.msra.mxu0 %v217
    %687 = vmatprep.subr.mxu0 0.0
    %688 = vmatpush2.msra.mxu0 %v216
    %689 = vmatprep.subr.mxu0 0.0
    %690 = vmatpush2.msra.mxu0 %v215
    %691 = vmatprep.subr.mxu0 0.0
    %692 = vmatpush2.msra.mxu0 %v214
    %693 = vmatprep.subr.mxu0 0.0
    %694 = vmatpush2.msra.mxu0 %v213
    %695 = vmatprep.subr.mxu0 0.0
    %696 = vmatpush2.msra.mxu0 %v212
    %697 = vmatprep.mubr.f32.mxu0 %v32
    %698 = vmatmul.mubr.f32.gmra.mxu0 %v31
    %v699 = vpop.f32.mrf.mxu0
    %v700 = vadd.f32 %v630, %v699
    %v701 = vpop.f32.mrf.mxu0
    %702 = vdwg.mxu0
    %703 = vmatprep.subr.mxu0 0.0
    %704 = vmatpush1.msra.mxu0 %v243
    %705 = vmatprep.subr.mxu0 0.0
    %706 = vmatpush1.msra.mxu0 %v242
    %707 = vmatprep.subr.mxu0 0.0
    %708 = vmatpush1.msra.mxu0 %v241
    %709 = vmatprep.subr.mxu0 0.0
    %710 = vmatpush1.msra.mxu0 %v240
    %711 = vmatprep.subr.mxu0 0.0
    %712 = vmatpush1.msra.mxu0 %v239
    %713 = vmatprep.subr.mxu0 0.0
    %714 = vmatpush1.msra.mxu0 %v238
    %715 = vmatprep.subr.mxu0 0.0
    %716 = vmatpush1.msra.mxu0 %v237
    %717 = vmatprep.subr.mxu0 0.0
    %718 = vmatpush1.msra.mxu0 %v236
    %719 = vmatprep.subr.mxu0 0.0
    %720 = vmatpush1.msra.mxu0 %v235
    %721 = vmatprep.subr.mxu0 0.0
    %722 = vmatpush1.msra.mxu0 %v234
    %723 = vmatprep.subr.mxu0 0.0
    %724 = vmatpush1.msra.mxu0 %v233
    %725 = vmatprep.subr.mxu0 0.0
    %726 = vmatpush1.msra.mxu0 %v232
    %727 = vmatprep.subr.mxu0 0.0
    %728 = vmatpush1.msra.mxu0 %v231
    %729 = vmatprep.subr.mxu0 0.0
    %730 = vmatpush1.msra.mxu0 %v230
    %731 = vmatprep.subr.mxu0 0.0
    %732 = vmatpush1.msra.mxu0 %v229
    %733 = vmatprep.subr.mxu0 0.0
    %734 = vmatpush1.msra.mxu0 %v228
    %735 = vmatprep.subr.mxu0 0.0
    %736 = vmatpush2.msra.mxu0 %v259
    %737 = vmatprep.subr.mxu0 0.0
    %738 = vmatpush2.msra.mxu0 %v258
    %739 = vmatprep.subr.mxu0 0.0
    %740 = vmatpush2.msra.mxu0 %v257
    %741 = vmatprep.subr.mxu0 0.0
    %742 = vmatpush2.msra.mxu0 %v256
    %743 = vmatprep.subr.mxu0 0.0
    %744 = vmatpush2.msra.mxu0 %v255
    %745 = vmatprep.subr.mxu0 0.0
    %746 = vmatpush2.msra.mxu0 %v254
    %747 = vmatprep.subr.mxu0 0.0
    %748 = vmatpush2.msra.mxu0 %v253
    %749 = vmatprep.subr.mxu0 0.0
    %750 = vmatpush2.msra.mxu0 %v252
    %751 = vmatprep.subr.mxu0 0.0
    %752 = vmatpush2.msra.mxu0 %v251
    %753 = vmatprep.subr.mxu0 0.0
    %754 = vmatpush2.msra.mxu0 %v250
    %755 = vmatprep.subr.mxu0 0.0
    %756 = vmatpush2.msra.mxu0 %v249
    %757 = vmatprep.subr.mxu0 0.0
    %758 = vmatpush2.msra.mxu0 %v248
    %759 = vmatprep.subr.mxu0 0.0
    %760 = vmatpush2.msra.mxu0 %v247
    %761 = vmatprep.subr.mxu0 0.0
    %762 = vmatpush2.msra.mxu0 %v246
    %763 = vmatprep.subr.mxu0 0.0
    %764 = vmatpush2.msra.mxu0 %v245
    %765 = vmatprep.subr.mxu0 0.0
    %766 = vmatpush2.msra.mxu0 %v244
    %767 = vmatprep.mubr.f32.mxu0 %v34
    %768 = vmatmul.mubr.f32.gmra.mxu0 %v33
    %v769 = vpop.f32.mrf.mxu0
    %v770 = vadd.f32 %v700, %v769
    %v771 = vpop.f32.mrf.mxu0
    %772 = vdwg.mxu0
    %773 = vmatprep.subr.mxu0 0.0
    %774 = vmatpush1.msra.mxu0 %v275
    %775 = vmatprep.subr.mxu0 0.0
    %776 = vmatpush1.msra.mxu0 %v274
    %777 = vmatprep.subr.mxu0 0.0
    %778 = vmatpush1.msra.mxu0 %v273
    %779 = vmatprep.subr.mxu0 0.0
    %780 = vmatpush1.msra.mxu0 %v272
    %781 = vmatprep.subr.mxu0 0.0
    %782 = vmatpush1.msra.mxu0 %v271
    %783 = vmatprep.subr.mxu0 0.0
    %784 = vmatpush1.msra.mxu0 %v270
    %785 = vmatprep.subr.mxu0 0.0
    %786 = vmatpush1.msra.mxu0 %v269
    %787 = vmatprep.subr.mxu0 0.0
    %788 = vmatpush1.msra.mxu0 %v268
    %789 = vmatprep.subr.mxu0 0.0
    %790 = vmatpush1.msra.mxu0 %v267
    %791 = vmatprep.subr.mxu0 0.0
    %792 = vmatpush1.msra.mxu0 %v266
    %793 = vmatprep.subr.mxu0 0.0
    %794 = vmatpush1.msra.mxu0 %v265
    %795 = vmatprep.subr.mxu0 0.0
    %796 = vmatpush1.msra.mxu0 %v264
    %797 = vmatprep.subr.mxu0 0.0
    %798 = vmatpush1.msra.mxu0 %v263
    %799 = vmatprep.subr.mxu0 0.0
    %800 = vmatpush1.msra.mxu0 %v262
    %801 = vmatprep.subr.mxu0 0.0
    %802 = vmatpush1.msra.mxu0 %v261
    %803 = vmatprep.subr.mxu0 0.0
    %804 = vmatpush1.msra.mxu0 %v260
    %805 = vmatprep.subr.mxu0 0.0
    %806 = vmatpush2.msra.mxu0 0.0
    %807 = vmatprep.subr.mxu0 0.0
    %808 = vmatpush2.msra.mxu0 0.0
    %809 = vmatprep.subr.mxu0 0.0
    %810 = vmatpush2.msra.mxu0 0.0
    %811 = vmatprep.subr.mxu0 0.0
    %812 = vmatpush2.msra.mxu0 0.0
    %813 = vmatprep.subr.mxu0 0.0
    %814 = vmatpush2.msra.mxu0 0.0
    %815 = vmatprep.subr.mxu0 0.0
    %816 = vmatpush2.msra.mxu0 0.0
    %817 = vmatprep.subr.mxu0 0.0
    %818 = vmatpush2.msra.mxu0 0.0
    %819 = vmatprep.subr.mxu0 0.0
    %820 = vmatpush2.msra.mxu0 0.0
    %821 = vmatprep.subr.mxu0 0.0
    %822 = vmatpush2.msra.mxu0 0.0
    %823 = vmatprep.subr.mxu0 0.0
    %824 = vmatpush2.msra.mxu0 0.0
    %825 = vmatprep.subr.mxu0 0.0
    %826 = vmatpush2.msra.mxu0 0.0
    %827 = vmatprep.subr.mxu0 0.0
    %828 = vmatpush2.msra.mxu0 0.0
    %829 = vmatprep.subr.mxu0 0.0
    %830 = vmatpush2.msra.mxu0 0.0
    %831 = vmatprep.subr.mxu0 0.0
    %832 = vmatpush2.msra.mxu0 0.0
    %833 = vmatprep.subr.mxu0 0.0
    %834 = vmatpush2.msra.mxu0 0.0
    %835 = vmatprep.subr.mxu0 0.0
    %836 = vmatpush2.msra.mxu0 0.0
    %837 = vmatprep.mubr.f32.mxu0 0.0
    %838 = vmatmul.mubr.f32.gmra.mxu0 %v35
    %v839 = vpop.f32.mrf.mxu0
    %v840 = vadd.f32 %v770, %v839
    %v841 = vpop.f32.mrf.mxu0
    %842 = vdwg.mxu0
    %v843 = vmax.f32 %v840, 0.0
    %v844 = vld [vmem:[%s3] sm:$0xff]
    %v845 = vld [vmem:[%s3 + $0x8] sm:$0xff]
    %v846 = vld [vmem:[%s3 + $0x10] sm:$0xff]
    %v847 = vld [vmem:[%s3 + $0x18] sm:$0xff]
    %v848 = vld [vmem:[%s4] sm:$0x1]
    %v850 = vlaneseq
    %v851 = vshrl.u32 %v850, 7
    %v852 = vsub.s32 0, %v851
    %v853 = vrot.slane %v848, %v852
    %vm855 = vcmask 261120
    %v857 = vsel %vm855, %v843, 0
    %859 = vmatprep.subr.mxu0 0.0
    %860 = vmatpush1.msra.mxu0 0.0
    %861 = vmatprep.subr.mxu0 0.0
    %862 = vmatpush1.msra.mxu0 0.0
    %863 = vmatprep.subr.mxu0 0.0
    %864 = vmatpush1.msra.mxu0 0.0
    %865 = vmatprep.subr.mxu0 0.0
    %866 = vmatpush1.msra.mxu0 0.0
    %867 = vmatprep.subr.mxu0 0.0
    %868 = vmatpush1.msra.mxu0 0.0
    %869 = vmatprep.subr.mxu0 0.0
    %870 = vmatpush1.msra.mxu0 0.0
    %871 = vmatprep.subr.mxu0 0.0
    %872 = vmatpush1.msra.mxu0 0.0
    %873 = vmatprep.subr.mxu0 0.0
    %874 = vmatpush1.msra.mxu0 0.0
    %875 = vmatprep.subr.mxu0 0.0
    %876 = vmatpush1.msra.mxu0 0.0
    %877 = vmatprep.subr.mxu0 0.0
    %878 = vmatpush1.msra.mxu0 0.0
    %879 = vmatprep.subr.mxu0 0.0
    %880 = vmatpush1.msra.mxu0 0.0
    %881 = vmatprep.subr.mxu0 0.0
    %882 = vmatpush1.msra.mxu0 0.0
    %883 = vmatprep.subr.mxu0 0.0
    %884 = vmatpush1.msra.mxu0 %v847
    %885 = vmatprep.subr.mxu0 0.0
    %886 = vmatpush1.msra.mxu0 %v846
    %887 = vmatprep.subr.mxu0 0.0
    %888 = vmatpush1.msra.mxu0 %v845
    %889 = vmatprep.subr.mxu0 0.0
    %890 = vmatpush1.msra.mxu0 %v844
    %891 = vmatprep.subr.mxu0 0.0
    %892 = vmatpush2.msra.mxu0 0.0
    %893 = vmatprep.subr.mxu0 0.0
    %894 = vmatpush2.msra.mxu0 0.0
    %895 = vmatprep.subr.mxu0 0.0
    %896 = vmatpush2.msra.mxu0 0.0
    %897 = vmatprep.subr.mxu0 0.0
    %898 = vmatpush2.msra.mxu0 0.0
    %899 = vmatprep.subr.mxu0 0.0
    %900 = vmatpush2.msra.mxu0 0.0
    %901 = vmatprep.subr.mxu0 0.0
    %902 = vmatpush2.msra.mxu0 0.0
    %903 = vmatprep.subr.mxu0 0.0
    %904 = vmatpush2.msra.mxu0 0.0
    %905 = vmatprep.subr.mxu0 0.0
    %906 = vmatpush2.msra.mxu0 0.0
    %907 = vmatprep.subr.mxu0 0.0
    %908 = vmatpush2.msra.mxu0 0.0
    %909 = vmatprep.subr.mxu0 0.0
    %910 = vmatpush2.msra.mxu0 0.0
    %911 = vmatprep.subr.mxu0 0.0
    %912 = vmatpush2.msra.mxu0 0.0
    %913 = vmatprep.subr.mxu0 0.0
    %914 = vmatpush2.msra.mxu0 0.0
    %915 = vmatprep.subr.mxu0 0.0
    %916 = vmatpush2.msra.mxu0 0.0
    %917 = vmatprep.subr.mxu0 0.0
    %918 = vmatpush2.msra.mxu0 0.0
    %919 = vmatprep.subr.mxu0 0.0
    %920 = vmatpush2.msra.mxu0 0.0
    %921 = vmatprep.subr.mxu0 0.0
    %922 = vmatpush2.msra.mxu0 0.0
    %923 = vmatprep.mubr.f32.mxu0 0.0
    %924 = vmatmul.mubr.f32.gmra.mxu0 %v857
    %v925 = vpop.f32.mrf.mxu0
    %v926 = vadd.f32 %v853, %v925
    %v927 = vpop.f32.mrf.mxu0
    %928 = vdwg.mxu0
    %v929 = vmul.f32 %v926, %v926
    %vm930 = vcmask 130048
    %v931 = vsel %vm930, %v929, 0.0
    %932 = vadd.xlane.f32.xlu0 %v931
    %v933 = vpop.xlane.xlu0 %932
    %v934 = vrsqrt.pop %v933
    %v935 = vmul.f32 %v926, %v934
    %936 = vst.msk [vmem:[#allocation2] sm:$0xff] %vm930, %v935
    // Predicated region
    $region22: #{tpu_custom_call.1} parent=1 // pred_check
      _
    $region23: #{tpu_custom_call.1} parent=1 // pred_check_branch
      %938 = sbr.rel (0) target = $region25
    $region24: #{tpu_custom_call.1} parent=1 // pred_region
      %s940 = ssub.s32 128, 128
      %941 = vsyncadd [#allocation3], %s940
      %s943 = sshll.u32 [#allocation2], 4
      %s944 = int_to_ptr.vmem [resolvable:$true] %s943
      %946 = dma.vmem_to_hbm [thread:$0]  %s944, 128, %s5, [#allocation3]
    $region25: #{tpu_custom_call.1} parent=1 // pred_fallthru
      _
    // Predicated region
    $region26: #{tpu_custom_call.1} parent=1 // pred_check
      _
    $region27: #{tpu_custom_call.1} parent=1 // pred_check_branch
      %948 = sbr.rel (0) target = $region29
    $region28: #{tpu_custom_call.1} parent=1 // pred_region
      %949 = dma.done [#allocation3], 128
    $region29: #{tpu_custom_call.1} parent=1 // pred_fallthru
      _
    %950 = vsyncpa [#allocation3], 1

</llo_original>
